<compile_context>
chip_gen: v7x
topology: tpu7x:2x2x1
jax: 0.10.0
libtpu: 0.0.40
codegen_flags: <defaults>
</compile_context>

<pallas_src>
import functools

import jax
import jax.numpy as jnp
from jax import lax
from jax.experimental import pallas as pl
from jax.experimental.pallas import tpu as pltpu

LANES = 128
MAX_TILE_ROWS = 8192      # (8192, 128) f32 = 4 MiB/input/buffer -> 16 MiB double-buffered
PAD_LOGIT = -1e4          # finite; with label 0 contributes exactly 0 loss (no NaN)


def _num_tensorcores() -> int:
    """TensorCores per device: 2 on megacore-style chips (v4/v5p/v7x), else 1."""
    try:
        kind = jax.devices()[0].device_kind.lower()
    except Exception:
        return 1
    return 2 if any(tag in kind for tag in ("v4", "v5p", "v7")) else 1


def _focal_loss_kernel(x_ref, y_ref, out_ref, *, alpha, gamma, num_rows,
                       tile_rows, tiles_per_core, needs_mask):
    p = pl.program_id(0)
    k = pl.program_id(1)

    @pl.when(k == 0)
    def _():
        out_ref[...] = jnp.zeros_like(out_ref)

    x = x_ref[...].astype(jnp.float32)
    y = y_ref[...].astype(jnp.float32)

    # One shared transcendental chain: e = exp(-|x|) feeds the sigmoid and both
    # stable log-sigmoid terms.  Reciprocal runs on the EUP slot (approx=False
    # to stay within the 1e-5 / 1e-6 test tolerance).
    e = jnp.exp(-jnp.abs(x))
    log1p_e = jnp.log1p(e)
    s = pl.reciprocal(1.0 + e, approx=False)        # sigmoid(|x|)
    probs = jnp.where(x >= 0.0, s, 1.0 - s)         # sigmoid(x)

    # min/max form (fewer VALU ops than two where-chains), identical values:
    #   x >= 0: log_probs = -log1p_e            log_1_probs = -x - log1p_e
    #   x <  0: log_probs = x - log1p_e         log_1_probs = -log1p_e
    log_probs = jnp.minimum(x, 0.0) - log1p_e
    log_1_probs = -jnp.maximum(x, 0.0) - log1p_e

    # Focal modulator |y - probs|^gamma, specialized at trace time.
    if gamma == 2.0:
        d = y - probs                      # abs not needed for an even power
        mod = d * d
    elif float(gamma).is_integer() and gamma >= 1.0:
        d = jnp.abs(y - probs)
        mod = d
        for _ in range(int(gamma) - 1):
            mod = mod * d
    else:
        mod = jnp.abs(y - probs) ** gamma

    loss = (y * alpha) * log_probs + ((1.0 - y) * (1.0 - alpha)) * log_1_probs
    loss = loss * (-mod)

    def _accumulate(vals):
        # Sublane reduce (XLU slot); cross-lane reduce happens in the wrapper.
        out_ref[...] += jnp.sum(vals, axis=0, keepdims=True).reshape(out_ref.shape)

    if needs_mask:
        # Logical (unclamped) tile owned by this step; rows past num_rows (or
        # duplicated rows from the clamped index_map) are zeroed before the
        # reduce.  Only boundary/overflow steps pay for the iota + select.
        row0 = (p * tiles_per_core + k) * tile_rows
        is_boundary = row0 + tile_rows > num_rows

        @pl.when(jnp.logical_not(is_boundary))
        def _():
            _accumulate(loss)

        @pl.when(is_boundary)
        def _():
            row_ids = row0 + lax.broadcasted_iota(jnp.int32, loss.shape, 0)
            _accumulate(jnp.where(row_ids < num_rows, loss, 0.0))
    else:
        _accumulate(loss)


def focal_loss_v1(logits, label, alpha=0.25, gamma=2.0, reduction="mean",
                  *, max_tile_rows=MAX_TILE_ROWS, num_cores=None):
    """JAX/Pallas equivalent of FocalLossV1.forward (reduction: 'mean'/'sum')."""
    assert logits.shape == label.shape
    total = int(logits.size)
    assert total > 0
    if reduction not in ("mean", "sum"):
        # TODO(synk): reduction='none' needs a per-element output map; only
        # 'mean' and 'sum' are implemented in this kernel.
        raise NotImplementedError("reduction='none' not implemented")

    x = logits.reshape(-1)
    y = label.reshape(-1)

    # Only pad to lane (128) alignment; everything else is handled in-kernel,
    # so there is no chunk-granularity jnp.pad HBM round trip.
    pad = (LANES - total % LANES) % LANES
    if pad:
        x = jnp.pad(x, (0, pad), constant_values=PAD_LOGIT)
        y = jnp.pad(y, (0, pad), constant_values=0)
    num_rows = (total + pad) // LANES
    x = x.reshape(num_rows, LANES)
    y = y.reshape(num_rows, LANES)

    # Tile sizing: biggest lane-dense tile that fits VMEM (memory-bound kernel).
    if num_rows <= max_tile_rows:
        tile_rows = num_rows                              # full dim: layout-legal
    else:
        tile_rows = max(32, (max_tile_rows // 32) * 32)   # 8/16/32-sublane safe

    total_tiles = pl.cdiv(num_rows, tile_rows)
    if num_cores is None:
        num_cores = _num_tensorcores()
    num_cores = max(1, min(int(num_cores), total_tiles))
    tiles_per_core = pl.cdiv(total_tiles, num_cores)
    total_steps = num_cores * tiles_per_core
    needs_mask = (total_steps * tile_rows) != num_rows
    last_tile = total_tiles - 1

    def in_map(p, k):
        # Clamp so every fetched block overlaps valid rows; steps whose logical
        # tile is past the end are fully masked inside the kernel.
        return (jnp.minimum(p * tiles_per_core + k, last_tile), 0)

    kernel = functools.partial(
        _focal_loss_kernel, alpha=float(alpha), gamma=float(gamma),
        num_rows=num_rows, tile_rows=tile_rows, tiles_per_core=tiles_per_core,
        needs_mask=needs_mask)

    in_bytes_per_row = LANES * (x.dtype.itemsize + y.dtype.itemsize)
    vmem_limit = int(min(max(2 * tile_rows * in_bytes_per_row + (2 << 20),
                             32 << 20), 56 << 20))

    out = pl.pallas_call(
        kernel,
        out_shape=jax.ShapeDtypeStruct((num_cores, 1, LANES), jnp.float32),
        grid_spec=pltpu.PrefetchScalarGridSpec(
            num_scalar_prefetch=0,
            grid=(num_cores, tiles_per_core),
            in_specs=[
                pl.BlockSpec((tile_rows, LANES), in_map),
                pl.BlockSpec((tile_rows, LANES), in_map),
            ],
            out_specs=pl.BlockSpec((1, 1, LANES), lambda p, k: (p, 0, 0)),
        ),
        compiler_params=pltpu.CompilerParams(
            dimension_semantics=("parallel", "arbitrary"),
            vmem_limit_bytes=vmem_limit),
    )(x, y)

    total_sum = jnp.sum(out)
    if reduction == "mean":
        return total_sum / float(total)
    return total_sum


def _focal_loss_ref(logits, label, alpha=0.25, gamma=2.0, reduction="mean"):
    x = logits.astype(jnp.float32)
    y = label.astype(jnp.float32)
    probs = jax.nn.sigmoid(x)
    coeff = -(jnp.abs(y - probs) ** gamma)
    log1p_exp = jnp.log1p(jnp.exp(-jnp.abs(x)))
    log_probs = jnp.where(x >= 0.0, -log1p_exp, x - log1p_exp)
    log_1_probs = jnp.where(x >= 0.0, -x - log1p_exp, -log1p_exp)
    loss = (y * alpha * log_probs + (1.0 - y) * (1.0 - alpha) * log_1_probs) * coeff
    return jnp.mean(loss) if reduction == "mean" else jnp.sum(loss)


if __name__ == "__main__":
    key = jax.random.PRNGKey(0)
    keys = jax.random.split(key, 6)

    # 1) Lane-aligned NCHW case (same convention as the PyTorch usage example).
    logits1 = jax.random.normal(keys[0], (2, 4, 16, 16), dtype=jnp.float32)
    label1 = jax.random.randint(keys[1], (2, 4, 16, 16), 0, 2).astype(jnp.float32)
    out1 = jax.block_until_ready(focal_loss_v1(logits1, label1))
    ref1 = jax.block_until_ready(_focal_loss_ref(logits1, label1))
    assert jnp.allclose(out1, ref1, rtol=1e-5, atol=1e-6), (out1, ref1)

    # 2) Non-lane-aligned shape -> small 128-alignment pad path.
    logits2 = jax.random.normal(keys[2], (2, 3, 17, 19), dtype=jnp.float32)
    label2 = jax.random.randint(keys[3], (2, 3, 17, 19), 0, 2).astype(jnp.float32)
    out2 = jax.block_until_ready(focal_loss_v1(logits2, label2))
    ref2 = jax.block_until_ready(_focal_loss_ref(logits2, label2))
    assert jnp.allclose(out2, ref2, rtol=1e-5, atol=1e-6), (out2, ref2)

    # 3) Multi-tile grid with a partial last tile + forced 2-core split:
    #    exercises the clamped index_map, boundary masking and 'sum' reduction.
    logits3 = jax.random.normal(keys[4], (2, 10, 128), dtype=jnp.float32)
    label3 = jax.random.randint(keys[5], (2, 10, 128), 0, 2).astype(jnp.float32)
    out3 = jax.block_until_ready(
        focal_loss_v1(logits3, label3, reduction="sum", max_tile_rows=8, num_cores=2))
    ref3 = jax.block_until_ready(_focal_loss_ref(logits3, label3, reduction="sum"))
    assert jnp.allclose(out3, ref3, rtol=1e-5, atol=1e-5), (out3, ref3)

    print("KERNEL_OK")
</pallas_src>

<mosaic_0001>
module attributes {stable_mosaic.version = 11 : i64} {
  func.func @_focal_loss_kernel(%arg0: i32, %arg1: i32, %arg2: memref<16x128xf32, #tpu.memory_space<vmem>>, %arg3: memref<16x128xf32, #tpu.memory_space<vmem>>, %arg4: memref<1x1x128xf32, #tpu.memory_space<vmem>>) attributes {dimension_semantics = [#tpu.dimension_semantics<parallel>, #tpu.dimension_semantics<arbitrary>], iteration_bounds = array<i64: 1, 1>, scalar_prefetch = 0 : i64, scratch_operands = 0 : i64, tpu.core_type = #tpu.core_type<tc>, window_params = [{transform_indices = @transform_0, window_bounds = array<i64: 16, 128>}, {transform_indices = @transform_1, window_bounds = array<i64: 16, 128>}, {transform_indices = @transform_2, window_bounds = array<i64: 1, 1, 128>}]} {
    %c0_i32 = arith.constant 0 : i32
    %0 = arith.cmpi eq, %arg1, %c0_i32 : i32
    %1 = arith.extui %0 : i1 to i32
    %c0_i32_0 = arith.constant 0 : i32
    %2 = arith.cmpi ne, %1, %c0_i32_0 : i32
    scf.if %2 {
      %cst_21 = arith.constant 0.000000e+00 : f32
      %46 = vector.broadcast %cst_21 : f32 to vector<1x1x128xf32>
      %c0_22 = arith.constant 0 : index
      %c0_23 = arith.constant 0 : index
      %c0_24 = arith.constant 0 : index
      %47 = vector.load %arg4[%c0_22, %c0_23, %c0_24] : memref<1x1x128xf32, #tpu.memory_space<vmem>>, vector<1x1x128xf32>
      tpu.vector_store %arg4[%c0_22, %c0_23, %c0_24], %46 {strides = array<i32>} : memref<1x1x128xf32, #tpu.memory_space<vmem>>, vector<1x1x128xf32>,
    } else {
    }
    %c0 = arith.constant 0 : index
    %c0_1 = arith.constant 0 : index
    %3 = vector.load %arg2[%c0, %c0_1] : memref<16x128xf32, #tpu.memory_space<vmem>>, vector<16x128xf32>
    %c0_2 = arith.constant 0 : index
    %c0_3 = arith.constant 0 : index
    %4 = vector.load %arg3[%c0_2, %c0_3] : memref<16x128xf32, #tpu.memory_space<vmem>>, vector<16x128xf32>
    %5 = math.absf %3 : vector<16x128xf32>
    %cst = arith.constant 0.000000e+00 : f32
    %6 = vector.broadcast %cst : f32 to vector<16x128xf32>
    %7 = arith.subf %6, %5 : vector<16x128xf32>
    %8 = math.exp %7 : vector<16x128xf32>
    %9 = math.log1p %8 : vector<16x128xf32>
    %cst_4 = arith.constant 1.000000e+00 : f32
    %10 = vector.broadcast %cst_4 : f32 to vector<16x128xf32>
    %11 = arith.addf %10, %8 : vector<16x128xf32>
    %12 = tpu.reciprocal %11 : vector<16x128xf32> -> vector<16x128xf32>
    %cst_5 = arith.constant 0.000000e+00 : f32
    %13 = vector.broadcast %cst_5 : f32 to vector<16x128xf32>
    %14 = arith.cmpf oge, %3, %13 : vector<16x128xf32>
    %cst_6 = arith.constant 1.000000e+00 : f32
    %15 = vector.broadcast %cst_6 : f32 to vector<16x128xf32>
    %16 = arith.subf %15, %12 : vector<16x128xf32>
    %17 = arith.select %14, %12, %16 : vector<16x128xi1>, vector<16x128xf32>
    %cst_7 = arith.constant 0.000000e+00 : f32
    %18 = vector.broadcast %cst_7 : f32 to vector<16x128xf32>
    %19 = arith.minimumf %3, %18 : vector<16x128xf32>
    %20 = arith.subf %19, %9 : vector<16x128xf32>
    %cst_8 = arith.constant 0.000000e+00 : f32
    %21 = vector.broadcast %cst_8 : f32 to vector<16x128xf32>
    %22 = arith.maximumf %3, %21 : vector<16x128xf32>
    %cst_9 = arith.constant 0.000000e+00 : f32
    %23 = vector.broadcast %cst_9 : f32 to vector<16x128xf32>
    %24 = arith.subf %23, %22 : vector<16x128xf32>
    %25 = arith.subf %24, %9 : vector<16x128xf32>
    %26 = arith.subf %4, %17 : vector<16x128xf32>
    %27 = arith.mulf %26, %26 : vector<16x128xf32>
    %cst_10 = arith.constant 2.500000e-01 : f32
    %28 = vector.broadcast %cst_10 : f32 to vector<16x128xf32>
    %29 = arith.mulf %4, %28 : vector<16x128xf32>
    %30 = arith.mulf %29, %20 : vector<16x128xf32>
    %cst_11 = arith.constant 1.000000e+00 : f32
    %31 = vector.broadcast %cst_11 : f32 to vector<16x128xf32>
    %32 = arith.subf %31, %4 : vector<16x128xf32>
    %cst_12 = arith.constant 7.500000e-01 : f32
    %33 = vector.broadcast %cst_12 : f32 to vector<16x128xf32>
    %34 = arith.mulf %32, %33 : vector<16x128xf32>
    %35 = arith.mulf %34, %25 : vector<16x128xf32>
    %36 = arith.addf %30, %35 : vector<16x128xf32>
    %cst_13 = arith.constant 0.000000e+00 : f32
    %37 = vector.broadcast %cst_13 : f32 to vector<16x128xf32>
    %38 = arith.subf %37, %27 : vector<16x128xf32>
    %39 = arith.mulf %36, %38 : vector<16x128xf32>
    %c0_14 = arith.constant 0 : index
    %c0_15 = arith.constant 0 : index
    %c0_16 = arith.constant 0 : index
    %40 = vector.load %arg4[%c0_14, %c0_15, %c0_16] : memref<1x1x128xf32, #tpu.memory_space<vmem>>, vector<1x1x128xf32>
    %cst_17 = arith.constant dense<0.000000e+00> : vector<128xf32>
    %41 = vector.multi_reduction <add>, %39, %cst_17 [0] : vector<16x128xf32> to vector<128xf32>
    %42 = vector.shape_cast %41 : vector<128xf32> to vector<1x128xf32>
    %43 = vector.shape_cast %42 : vector<1x128xf32> to vector<1x1x128xf32>
    %44 = arith.addf %40, %43 : vector<1x1x128xf32>
    %c0_18 = arith.constant 0 : index
    %c0_19 = arith.constant 0 : index
    %c0_20 = arith.constant 0 : index
    %45 = vector.load %arg4[%c0_18, %c0_19, %c0_20] : memref<1x1x128xf32, #tpu.memory_space<vmem>>, vector<1x1x128xf32>
    tpu.vector_store %arg4[%c0_18, %c0_19, %c0_20], %44 {strides = array<i32>} : memref<1x1x128xf32, #tpu.memory_space<vmem>>, vector<1x1x128xf32>,
    return
  }
  func.func @transform_0(%arg0: i32, %arg1: i32) -> (i32, i32) {
    %c1_i32 = arith.constant 1 : i32
    %0 = arith.muli %arg0, %c1_i32 : i32
    %1 = arith.addi %0, %arg1 : i32
    %c0_i32 = arith.constant 0 : i32
    %2 = arith.minsi %1, %c0_i32 : i32
    %c0_i32_0 = arith.constant 0 : i32
    %c0_i32_1 = arith.constant 0 : i32
    return %2, %c0_i32_0 : i32, i32
  }
  func.func @transform_1(%arg0: i32, %arg1: i32) -> (i32, i32) {
    %c1_i32 = arith.constant 1 : i32
    %0 = arith.muli %arg0, %c1_i32 : i32
    %1 = arith.addi %0, %arg1 : i32
    %c0_i32 = arith.constant 0 : i32
    %2 = arith.minsi %1, %c0_i32 : i32
    %c0_i32_0 = arith.constant 0 : i32
    %c0_i32_1 = arith.constant 0 : i32
    return %2, %c0_i32_0 : i32, i32
  }
  func.func @transform_2(%arg0: i32, %arg1: i32) -> (i32, i32, i32) {
    %c0_i32 = arith.constant 0 : i32
    %c0_i32_0 = arith.constant 0 : i32
    %c0_i32_1 = arith.constant 0 : i32
    return %arg0, %c0_i32, %c0_i32_0 : i32, i32, i32
  }
}

</mosaic_0001>

<llo_original>
// kernel: tpu_custom_call.1
$region0: #{tpu_custom_call.1}
  #allocation0 [shape = 'u32[]', space=smem, size = 0x4, offset = 0x4, fixed_abs, tag = 'smem constant byte address 0x4 - core index']
  #allocation1 [shape = 'u32[144,128]{1,0:T(1,128)}', space=vmem, size = 0x12000, scoped, tag = 'internal scratch']
  %s0 = inlined_call_operand.hbm [shape: f32[16,128], index: 0, kind: input, shape index: {}]
  %s1 = inlined_call_operand.hbm [shape: f32[16,128], index: 1, kind: input, shape index: {}]
  %s2 = inlined_call_operand.hbm [shape: f32[1,1,128], index: 2, kind: output, shape index: {}]
  %s3 = sld [smem:[#allocation0]]
  $region30: #{tpu_custom_call.1} parent=0
    _
  %s5 = ssub.s32 1, %s3
  %s6 = scalar_select 0, %s5, %s3
  $region1: #{tpu_custom_call.1} parent=0
    #allocation2 [shape = 'u8[8192]{0}', space=vmem, size = 0x2000, scoped, tag = 'input window, operand 0, single buffered']
    #allocation3 [shape = 's32[1]{0}', space=sflag, size = 0x4, scoped, tag = 'scoped memory for tpu_custom_call.1']
    #allocation4 [shape = 's32[1]{0}', space=sflag, size = 0x4, scoped, tag = 'scoped memory for tpu_custom_call.1']
    #allocation5 [shape = 'u8[8192]{0}', space=vmem, size = 0x2000, scoped, tag = 'input window, operand 1, single buffered']
    #allocation6 [shape = 's32[1]{0}', space=sflag, size = 0x4, scoped, tag = 'scoped memory for tpu_custom_call.1']
    #allocation7 [shape = 'u8[512]{0}', space=vmem, size = 0x400, scoped, tag = 'output window, operand 0, single buffered']
    %7 = vsyncpa [#allocation3], 0
    %8 = vsyncpa [#allocation6], 0
    %9 = vsyncpa [#allocation4], 0
    // Predicated region
    $region2: #{tpu_custom_call.1} parent=1 // pred_check
      _
    $region3: #{tpu_custom_call.1} parent=1 // pred_check_branch
      %11 = sbr.rel (0) target = $region5
    $region4: #{tpu_custom_call.1} parent=1 // pred_region
      %s12 = sadd.s32 0, 0
      %p13 = scmp.lt.s32.totalorder %s12, 0
      %s14 = scalar_select %p13, %s12, 0
      %s15 = smul.u32 2, %s14
      %s17 = ssub.s32 256, 256
      %18 = vsyncadd [#allocation3], %s17
      %s19 = smul.addr %s15, 128
      %s20 = scalar_lea.hbm %s0, %s19
      %s21 = sshll.u32 [#allocation2], 4
      %s22 = int_to_ptr.vmem [resolvable:$true] %s21
      %27 = dma.hbm_to_vmem [thread:$0]  %s20, 256, %s22, [#allocation3], 128, 128, 8
    $region5: #{tpu_custom_call.1} parent=1 // pred_fallthru
      _
    // Predicated region
    $region6: #{tpu_custom_call.1} parent=1 // pred_check
      _
    $region7: #{tpu_custom_call.1} parent=1 // pred_check_branch
      %29 = sbr.rel (0) target = $region9
    $region8: #{tpu_custom_call.1} parent=1 // pred_region
      %s30 = sadd.s32 0, 0
      %p31 = scmp.lt.s32.totalorder %s30, 0
      %s32 = scalar_select %p31, %s30, 0
      %s33 = smul.u32 2, %s32
      %s35 = ssub.s32 256, 256
      %36 = vsyncadd [#allocation6], %s35
      %s37 = smul.addr %s33, 128
      %s38 = scalar_lea.hbm %s1, %s37
      %s39 = sshll.u32 [#allocation5], 4
      %s40 = int_to_ptr.vmem [resolvable:$true] %s39
      %45 = dma.hbm_to_vmem [thread:$0]  %s38, 256, %s40, [#allocation6], 128, 128, 8
    $region9: #{tpu_custom_call.1} parent=1 // pred_fallthru
      _
    // Predicated region
    $region10: #{tpu_custom_call.1} parent=1 // pred_check
      _
    $region11: #{tpu_custom_call.1} parent=1 // pred_check_branch
      %47 = sbr.rel (0) target = $region13
    $region12: #{tpu_custom_call.1} parent=1 // pred_region
      %48 = dma.done [#allocation3], 256
    $region13: #{tpu_custom_call.1} parent=1 // pred_fallthru
      _
    // Predicated region
    $region14: #{tpu_custom_call.1} parent=1 // pred_check
      _
    $region15: #{tpu_custom_call.1} parent=1 // pred_check_branch
      %50 = sbr.rel (0) target = $region17
    $region16: #{tpu_custom_call.1} parent=1 // pred_region
      %51 = dma.done [#allocation6], 256
    $region17: #{tpu_custom_call.1} parent=1 // pred_fallthru
      _
    %s52 = sadd.s32 0, 0
    %p53 = scmp.lt.s32.totalorder %s52, 0
    %s54 = scalar_select %p53, %s52, 0
    %s55 = smul.u32 2, %s54
    %s56 = sadd.s32 0, 0
    %p57 = scmp.lt.s32.totalorder %s56, 0
    %s58 = scalar_select %p57, %s56, 0
    %s59 = smul.u32 2, %s58
    %p60 = scmp.eq.s32.totalorder 0, 0
    // Predicated region
    $region18: #{tpu_custom_call.1} parent=1 // pred_check
      %p61 = pneg %p60
    $region19: #{tpu_custom_call.1} parent=1 // pred_check_branch
      %63 = sbr.rel (%p61) target = $region21
    $region20: #{tpu_custom_call.1} parent=1 // pred_region
      %64 = vst [vmem:[#allocation7] sm:$0x1] 0.0
    $region21: #{tpu_custom_call.1} parent=1 // pred_fallthru
      _
    %v65 = vld [vmem:[#allocation2] sm:$0xff]
    %v66 = vld [vmem:[#allocation2 + $0x8] sm:$0xff]
    %v67 = vld [vmem:[#allocation5] sm:$0xff]
    %v68 = vld [vmem:[#allocation5 + $0x8] sm:$0xff]
    %v69 = vand.u32 2147483647, %v65
    %v70 = vand.u32 2147483647, %v66
    %v71 = vsub.f32 0.0, %v69
    %v72 = vsub.f32 0.0, %v70
    %v73 = vmul.f32 %v71, 1.442695
    %v74 = vpow.pop %v73
    %v75 = vmul.f32 %v72, 1.442695
    %v76 = vpow.pop %v75
    %v77 = vadd.f32 %v74, 1.0
    %v78 = vlog2.pop %v77
    %v79 = vmul.f32 %v78, 0.6931472
    %v80 = vmul.f32 -0.5, %v74
    %v81 = vadd.f32 %v80, 1.0
    %v82 = vmul.f32 %v81, %v74
    %v83 = vand.u32 2147483647, %v74
    %vm84 = vcmp.lt.f32.partialorder %v83, 0.0004427343
    %v85 = vsel %vm84, %v82, %v79
    %v86 = vadd.f32 %v76, 1.0
    %v87 = vlog2.pop %v86
    %v88 = vmul.f32 %v87, 0.6931472
    %v89 = vmul.f32 -0.5, %v76
    %v90 = vadd.f32 %v89, 1.0
    %v91 = vmul.f32 %v90, %v76
    %v92 = vand.u32 2147483647, %v76
    %vm93 = vcmp.lt.f32.partialorder %v92, 0.0004427343
    %v94 = vsel %vm93, %v91, %v88
    %v95 = vadd.f32 %v74, 1.0
    %v96 = vadd.f32 %v76, 1.0
    %v97 = vrcp.pop %v95
    %v98 = vrcp.pop %v96
    %vm99 = vcmp.ge.f32.partialorder %v65, 0.0
    %vm100 = vcmp.ge.f32.partialorder %v66, 0.0
    %v101 = vsub.f32 1.0, %v97
    %v102 = vsub.f32 1.0, %v98
    %v103 = vsel %vm99, %v97, %v101
    %v104 = vsel %vm100, %v98, %v102
    %v105 = vmin.f32 %v65, 0.0
    %v106 = vmin.f32 %v66, 0.0
    %v107 = vsub.f32 %v105, %v85
    %v108 = vsub.f32 %v106, %v94
    %v109 = vmax.f32 %v65, 0.0
    %v110 = vmax.f32 %v66, 0.0
    %v111 = vsub.f32 0.0, %v109
    %v112 = vsub.f32 0.0, %v110
    %v113 = vsub.f32 %v111, %v85
    %v114 = vsub.f32 %v112, %v94
    %v115 = vsub.f32 %v67, %v103
    %v116 = vsub.f32 %v68, %v104
    %v117 = vmul.f32 %v115, %v115
    %v118 = vmul.f32 %v116, %v116
    %v119 = vmul.f32 %v67, 0.25
    %v120 = vmul.f32 %v68, 0.25
    %v121 = vmul.f32 %v119, %v107
    %v122 = vmul.f32 %v120, %v108
    %v123 = vsub.f32 1.0, %v67
    %v124 = vsub.f32 1.0, %v68
    %v125 = vmul.f32 %v123, 0.75
    %v126 = vmul.f32 %v124, 0.75
    %v127 = vmul.f32 %v125, %v113
    %v128 = vmul.f32 %v126, %v114
    %v129 = vadd.f32 %v121, %v127
    %v130 = vadd.f32 %v122, %v128
    %v131 = vsub.f32 0.0, %v117
    %v132 = vsub.f32 0.0, %v118
    %v133 = vmul.f32 %v129, %v131
    %v134 = vmul.f32 %v130, %v132
    %v135 = vld [vmem:[#allocation7] sm:$0x1]
    %v136 = vadd.f32 %v133, %v134
    %v137 = vrot.slane %v136, 4
    %v138 = vadd.f32 %v136, %v137
    %v139 = vrot.slane %v138, 2
    %v140 = vadd.f32 %v138, %v139
    %v141 = vrot.slane %v140, 1
    %v142 = vadd.f32 %v140, %v141
    %v143 = vadd.f32 %v135, %v142
    %144 = vst [vmem:[#allocation7] sm:$0x1] %v143
    // Predicated region
    $region22: #{tpu_custom_call.1} parent=1 // pred_check
      _
    $region23: #{tpu_custom_call.1} parent=1 // pred_check_branch
      %146 = sbr.rel (0) target = $region25
    $region24: #{tpu_custom_call.1} parent=1 // pred_region
      %s148 = ssub.s32 16, 16
      %149 = vsyncadd [#allocation4], %s148
      %s151 = sshll.u32 [#allocation7], 4
      %s152 = int_to_ptr.vmem [resolvable:$true] %s151
      %154 = dma.vmem_to_hbm [thread:$0]  %s152, 16, %s2, [#allocation4]
    $region25: #{tpu_custom_call.1} parent=1 // pred_fallthru
      _
    // Predicated region
    $region26: #{tpu_custom_call.1} parent=1 // pred_check
      _
    $region27: #{tpu_custom_call.1} parent=1 // pred_check_branch
      %156 = sbr.rel (0) target = $region29
    $region28: #{tpu_custom_call.1} parent=1 // pred_region
      %157 = dma.done [#allocation4], 16
    $region29: #{tpu_custom_call.1} parent=1 // pred_fallthru
      _
    %158 = vsyncpa [#allocation3], 1
    %159 = vsyncpa [#allocation6], 1
    %160 = vsyncpa [#allocation4], 1

</llo_original>
